<compile_context>
chip_gen: v6e
topology: v6e:2x2x1
jax: 0.10.0
libtpu: 0.0.40
codegen_flags: <defaults>
</compile_context>

<pallas_src>
import functools
import math

import numpy as np
import jax
import jax.numpy as jnp
from jax.experimental import pallas as pl
from jax.experimental.pallas import tpu as pltpu


# ----------------------------------------------------------------------------- #
# Parameter / operator setup (plain numpy / JAX glue)
# ----------------------------------------------------------------------------- #
def _round_up(x: int, m: int) -> int:
    return (x + m - 1) // m * m


def _adaptive_pool_matrix(in_size: int, out_size: int) -> np.ndarray:
    """Matrix P (out, in) implementing PyTorch 1-D adaptive average pooling."""
    P = np.zeros((out_size, in_size), dtype=np.float32)
    for i in range(out_size):
        s = (i * in_size) // out_size
        e = -(-((i + 1) * in_size) // out_size)  # ceil
        P[i, s:e] = 1.0 / (e - s)
    return P


def _band_matrices(C: int, k: int, w):
    """Decompose a 1-D conv (kernel k, pad (k-1)//2, no bias) applied to the
    spatial-major / channel-minor flattening of an (L3, C) array into three
    (C, C) matrices:
      A  : taps that stay inside the same spatial cell
      Bn : taps that reach into the NEXT spatial cell
      Bu : taps that reach into the PREVIOUS spatial cell
    so that conv(flatten(S)) (reshaped back) == S@A + next(S)@Bn + prev(S)@Bu."""
    p = (k - 1) // 2
    assert p < C, "conv half-width must be smaller than the channel count"
    A = jnp.zeros((C, C), jnp.float32)
    Bn = jnp.zeros((C, C), jnp.float32)
    Bu = jnp.zeros((C, C), jnp.float32)
    for j in range(k):
        o = j - p
        Ej = np.zeros((C, C), np.float32)
        Fj = np.zeros((C, C), np.float32)
        Gj = np.zeros((C, C), np.float32)
        for c in range(C):
            a = c + o
            if 0 <= a < C:
                Ej[a, c] = 1.0
            elif a >= C:
                Fj[a - C, c] = 1.0
            else:
                Gj[a + C, c] = 1.0
        A = A + w[j] * Ej
        Bn = Bn + w[j] * Fj
        Bu = Bu + w[j] * Gj
    return A, Bn, Bu


def mlca3d_init(in_size: int, key, gamma: int = 2, b: int = 1):
    """Deterministic synthetic init matching the module's __init__ shapes."""
    t = int(abs(math.log(in_size, 2) + b) / gamma)
    k = t if t % 2 else t + 1
    k1, k2 = jax.random.split(key)
    bound = 1.0 / math.sqrt(k)
    w_global = jax.random.uniform(k1, (k,), jnp.float32, -bound, bound)  # self.conv
    w_local = jax.random.uniform(k2, (k,), jnp.float32, -bound, bound)   # self.conv_local
    return w_local, w_global, k


def _choose_batch_block(B: int, C: int, target_rows: int = 256) -> int:
    """Largest divisor B_blk of B such that:
      * B_blk*C <= target_rows (MXU M saturation: 128 on v5e, 256 on v6e/v7x),
      * B_blk*C is sublane-aligned (multiple of 8) unless B_blk == B,
      * at least two grid steps remain when B >= 2 (v7x has 2 TensorCores).
    Falls back progressively if no divisor satisfies everything."""
    divisors = [d for d in range(1, B + 1) if B % d == 0]
    aligned = [d for d in divisors if (d * C) % 8 == 0 or d == B]
    for cond in (
        lambda d: d * C <= target_rows and (B // d >= 2 or B == 1),
        lambda d: (B // d >= 2 or B == 1),
        lambda d: True,
    ):
        cand = [d for d in aligned if cond(d)]
        if cand:
            return max(cand)
    return B


# ----------------------------------------------------------------------------- #
# Pallas kernel: one grid step handles B_blk batch elements, all 2-D lane-dense
# ----------------------------------------------------------------------------- #
def _mlca3d_kernel(x_ref, wpool_ref, wup_ref, wconv_ref, o_ref, *,
                   local_weight, l3_real, l3_pad):
    f32 = jnp.float32
    R = x_ref.shape[0]                       # B_blk * C rows

    x = x_ref[...]                           # (R, DMNp) caller dtype, lane-dense
    xm = x.astype(jnp.bfloat16)              # bf16 MXU operand, f32 accumulation

    # local adaptive average pool: one big MXU matmul over all spatial positions
    local = jnp.dot(xm, wpool_ref[...], preferred_element_type=f32)     # (R, L3p)

    # fused per-element channel mixing (conv_local same/next/prev taps + global
    # conv) as a single block-diagonal matmul; pad lanes of `local` are zero, so
    # pad lanes of every slice below stay zero.
    z = jnp.dot(wconv_ref[...], local, preferred_element_type=f32)      # (4R, L3p)
    z_same = z[0 * R:1 * R]
    z_next = z[1 * R:2 * R]
    z_prev = z[2 * R:3 * R]
    z_glob = z[3 * R:4 * R]

    # spatial carries of the flattened Conv1d = lane rotations on the XLU.
    # lane p picks up z_next[p+1] / z_prev[p-1]; the wrapped lane lands on a
    # zero pad lane (l3_real < l3_pad), so no masking is needed there.
    nxt = pltpu.roll(z_next, shift=l3_pad - 1, axis=1)   # out[p] = z_next[p+1]
    prv = pltpu.roll(z_prev, shift=1, axis=1)            # out[p] = z_prev[p-1]
    if l3_real == l3_pad:  # no pad lanes -> explicitly zero the wrapped lane
        lane = jax.lax.broadcasted_iota(jnp.int32, (R, l3_pad), 1)
        nxt = jnp.where(lane == l3_pad - 1, 0.0, nxt)
        prv = jnp.where(lane == 0, 0.0, prv)
    y_loc = z_same + nxt + prv                                          # (R, L3p)

    # global conv of the global average pool; by linearity reuse the fused
    # matmul and average over the REAL (unpadded) cell count.
    y_glb = jnp.sum(z_glob, axis=1, keepdims=True) * (1.0 / float(l3_real))

    att_local = jax.nn.sigmoid(y_loc)                                   # f32 VPU/EUP
    att_global = jax.nn.sigmoid(y_glb)                                  # (R, 1)
    mix = att_global * (1.0 - local_weight) + att_local * local_weight  # (R, L3p)

    # adaptive avg "upsample" back to full resolution + channel-attention gating
    att = jnp.dot(mix.astype(jnp.bfloat16), wup_ref[...],
                  preferred_element_type=f32)                           # (R, DMNp)
    o_ref[...] = (x.astype(f32) * att).astype(o_ref.dtype)              # lane-dense store


# ----------------------------------------------------------------------------- #
# Wrapper
# ----------------------------------------------------------------------------- #
@functools.partial(jax.jit, static_argnames=("local_size", "local_weight"))
def mlca3d_pallas(x, w_local, w_global, *, local_size=5, local_weight=0.5):
    B, C, D, M, N = x.shape
    L = int(local_size)
    L3 = L * L * L
    DMN = D * M * N
    k = int(w_local.shape[0])

    L3_pad = _round_up(L3, 128)
    DMN_pad = _round_up(DMN, 128)
    B_blk = _choose_batch_block(B, C)
    R = B_blk * C

    # Pool / upsample operators as Kronecker products of 1-D adaptive-pool
    # matrices, zero-padded to lane-aligned shapes and stored in bf16 (the MXU
    # operand dtype).  Padded Wpool columns / Wup rows are exactly zero so the
    # pad lanes never contribute to the result.
    Pd, Pm, Pn = (_adaptive_pool_matrix(s, L) for s in (D, M, N))
    Ud, Um, Un = (_adaptive_pool_matrix(L, s) for s in (D, M, N))
    wpool_np = np.zeros((DMN_pad, L3_pad), np.float32)
    wpool_np[:DMN, :L3] = np.kron(np.kron(Pd, Pm), Pn).T
    wup_np = np.zeros((L3_pad, DMN_pad), np.float32)
    wup_np[:L3, :DMN] = np.kron(np.kron(Ud, Um), Un).T
    Wpool = jnp.asarray(wpool_np, jnp.bfloat16)          # (DMNp, L3p)
    Wup = jnp.asarray(wup_np, jnp.bfloat16)              # (L3p, DMNp)

    # Fused channel-mixing operator, block-diagonal over the B_blk batch
    # elements sharing a grid step (rows grouped by tap type), kept in f32
    # (tiny).  [same-cell taps ; next-cell carry ; prev-cell carry ; global conv]
    A_l, Bn_l, Bu_l = _band_matrices(C, k, w_local.astype(jnp.float32))
    A_g, _, _ = _band_matrices(C, k, w_global.astype(jnp.float32))
    eye = jnp.eye(B_blk, dtype=jnp.float32)
    Wconv = jnp.concatenate(
        [jnp.kron(eye, A_l.T), jnp.kron(eye, Bn_l.T),
         jnp.kron(eye, Bu_l.T), jnp.kron(eye, A_g.T)], axis=0)          # (4R, R)

    # channel-first flattened-spatial layout: pure reshape (+ optional zero pad
    # of the lane axis to a multiple of 128), no transpose, no cast.
    x_flat = x.reshape(B * C, DMN)
    if DMN_pad != DMN:
        x_flat = jnp.pad(x_flat, ((0, 0), (0, DMN_pad - DMN)))

    itemsize = x.dtype.itemsize
    needed = (4 * R * DMN_pad * itemsize            # in + out blocks, double-buffered
              + 2 * DMN_pad * L3_pad * 2            # Wpool + Wup (bf16, single-buffered)
              + 4 * R * R * 4 * 2                   # Wconv (f32)
              + 8 * R * (DMN_pad + L3_pad) * 4)     # in-kernel f32 intermediates
    vmem_limit = int(min(max(2 * needed, 32 * 2**20), 64 * 2**20))

    cost = pl.CostEstimate(
        flops=int(4 * B * C * DMN_pad * L3_pad),
        transcendentals=int(B * C * (L3_pad + 1)),
        bytes_accessed=int(2 * B * C * DMN_pad * itemsize
                           + 2 * DMN_pad * L3_pad * 2 + 4 * R * R * 4),
    )

    kernel = functools.partial(_mlca3d_kernel, local_weight=float(local_weight),
                               l3_real=L3, l3_pad=L3_pad)

    out = pl.pallas_call(
        kernel,
        out_shape=jax.ShapeDtypeStruct((B * C, DMN_pad), x.dtype),
        grid=(B // B_blk,),
        in_specs=[
            pl.BlockSpec((R, DMN_pad), lambda b: (b, 0)),
            # constants: same block every step; single-buffer to halve their
            # VMEM footprint (matters on v7x's 64 MiB VMEM at larger shapes)
            pl.BlockSpec((DMN_pad, L3_pad), lambda b: (0, 0),
                         pipeline_mode=pl.Buffered(1)),
            pl.BlockSpec((L3_pad, DMN_pad), lambda b: (0, 0),
                         pipeline_mode=pl.Buffered(1)),
            pl.BlockSpec((4 * R, R), lambda b: (0, 0),
                         pipeline_mode=pl.Buffered(1)),
        ],
        out_specs=pl.BlockSpec((R, DMN_pad), lambda b: (b, 0)),
        compiler_params=pltpu.CompilerParams(
            dimension_semantics=("parallel",),
            vmem_limit_bytes=vmem_limit),
        cost_estimate=cost,
    )(x_flat, Wpool, Wup, Wconv)

    if DMN_pad != DMN:
        out = out[:, :DMN]
    return out.reshape(B, C, D, M, N)


# ----------------------------------------------------------------------------- #
# Pure-JAX reference (literal translation of the PyTorch forward) for checking
# ----------------------------------------------------------------------------- #
def mlca3d_reference(x, w_local, w_global, *, local_size=5, local_weight=0.5):
    B, C, D, M, N = x.shape
    L = local_size
    k = int(w_local.shape[0])
    p = (k - 1) // 2
    Pd, Pm, Pn = (jnp.asarray(_adaptive_pool_matrix(s, L)) for s in (D, M, N))
    Ud, Um, Un = (jnp.asarray(_adaptive_pool_matrix(L, s)) for s in (D, M, N))

    local = jnp.einsum("pi,qj,rk,bcijk->bcpqr", Pd, Pm, Pn, x)    # (B,C,L,L,L)
    gm = jnp.mean(local, axis=(2, 3, 4))                          # (B,C)

    seq = local.reshape(B, C, L ** 3).transpose(0, 2, 1).reshape(B, L ** 3 * C)
    seq_pad = jnp.pad(seq, ((0, 0), (p, p)))
    Nlen = L ** 3 * C
    y_loc = sum(w_local[j] * seq_pad[:, j:j + Nlen] for j in range(k))
    gm_pad = jnp.pad(gm, ((0, 0), (p, p)))
    y_glb = sum(w_global[j] * gm_pad[:, j:j + C] for j in range(k))

    att_local = jax.nn.sigmoid(
        y_loc.reshape(B, L ** 3, C).transpose(0, 2, 1).reshape(B, C, L, L, L))
    att_global = jax.nn.sigmoid(y_glb)[:, :, None, None, None]
    mixed = att_global * (1.0 - local_weight) + att_local * local_weight
    att_all = jnp.einsum("ip,jq,kr,bcpqr->bcijk", Ud, Um, Un, mixed)
    return x * att_all


# ----------------------------------------------------------------------------- #
if __name__ == "__main__":
    key = jax.random.PRNGKey(0)
    B, C, D, M, N = 4, 8, 8, 8, 8        # NCDHW, in_size == C == 8 -> k == 3
    kx, kp = jax.random.split(key)
    x = jax.random.normal(kx, (B, C, D, M, N), jnp.float32)
    w_local, w_global, k = mlca3d_init(C, kp)

    out = mlca3d_pallas(x, w_local, w_global, local_size=5, local_weight=0.5)
    out = jax.block_until_ready(out)

    ref = mlca3d_reference(x, w_local, w_global, local_size=5, local_weight=0.5)
    if not np.allclose(np.asarray(out), np.asarray(ref), rtol=5e-2, atol=5e-2):
        raise AssertionError("Pallas MLCA3D output mismatch vs JAX reference")
    print("KERNEL_OK")
</pallas_src>

<mosaic_0001>
module attributes {stable_mosaic.version = 11 : i64} {
  func.func @_mlca3d_kernel(%arg0: i32, %arg1: memref<16x512xf32, #tpu.memory_space<vmem>>, %arg2: memref<512x128xbf16, #tpu.memory_space<vmem>>, %arg3: memref<128x512xbf16, #tpu.memory_space<vmem>>, %arg4: memref<64x16xf32, #tpu.memory_space<vmem>>, %arg5: memref<16x512xf32, #tpu.memory_space<vmem>>) attributes {dimension_semantics = [#tpu.dimension_semantics<parallel>], iteration_bounds = array<i64: 2>, scalar_prefetch = 0 : i64, scratch_operands = 0 : i64, tpu.core_type = #tpu.core_type<tc>, window_params = [{transform_indices = @transform_0, window_bounds = array<i64: 16, 512>}, {pipeline_mode = #tpu.pipeline_mode<synchronous>, transform_indices = @transform_1, window_bounds = array<i64: 512, 128>}, {pipeline_mode = #tpu.pipeline_mode<synchronous>, transform_indices = @transform_2, window_bounds = array<i64: 128, 512>}, {pipeline_mode = #tpu.pipeline_mode<synchronous>, transform_indices = @transform_3, window_bounds = array<i64: 64, 16>}, {transform_indices = @transform_4, window_bounds = array<i64: 16, 512>}]} {
    %c0 = arith.constant 0 : index
    %c0_0 = arith.constant 0 : index
    %0 = vector.load %arg1[%c0, %c0_0] : memref<16x512xf32, #tpu.memory_space<vmem>>, vector<16x512xf32>
    %1 = arith.truncf %0 : vector<16x512xf32> to vector<16x512xbf16>
    %c0_1 = arith.constant 0 : index
    %c0_2 = arith.constant 0 : index
    %2 = vector.load %arg2[%c0_1, %c0_2] : memref<512x128xbf16, #tpu.memory_space<vmem>>, vector<512x128xbf16>
    %cst = arith.constant dense<0.000000e+00> : vector<16x128xf32>
    %3 = tpu.matmul %1, %2, %cst {dimension_numbers = #tpu.dot_dimension_numbers<[1], [0], [0], [1], [0, 0, 1, 1], [], []>} : vector<16x512xbf16>, vector<512x128xbf16>, vector<16x128xf32> -> vector<16x128xf32>
    %c0_3 = arith.constant 0 : index
    %c0_4 = arith.constant 0 : index
    %4 = vector.load %arg4[%c0_3, %c0_4] : memref<64x16xf32, #tpu.memory_space<vmem>>, vector<64x16xf32>
    %cst_5 = arith.constant dense<0.000000e+00> : vector<64x128xf32>
    %5 = tpu.matmul %4, %3, %cst_5 {dimension_numbers = #tpu.dot_dimension_numbers<[1], [0], [0], [1], [0, 0, 1, 1], [], []>} : vector<64x16xf32>, vector<16x128xf32>, vector<64x128xf32> -> vector<64x128xf32>
    %6 = vector.extract_strided_slice %5 {offsets = [0, 0], sizes = [16, 128], strides = [1, 1]} : vector<64x128xf32> to vector<16x128xf32>
    %7 = vector.extract_strided_slice %5 {offsets = [16, 0], sizes = [16, 128], strides = [1, 1]} : vector<64x128xf32> to vector<16x128xf32>
    %8 = vector.extract_strided_slice %5 {offsets = [32, 0], sizes = [16, 128], strides = [1, 1]} : vector<64x128xf32> to vector<16x128xf32>
    %9 = vector.extract_strided_slice %5 {offsets = [48, 0], sizes = [16, 128], strides = [1, 1]} : vector<64x128xf32> to vector<16x128xf32>
    %c127_i32 = arith.constant 127 : i32
    %10 = tpu.dynamic_rotate %7 by %c127_i32 dim 1 : vector<16x128xf32>, i32 -> vector<16x128xf32>
    %c1_i32 = arith.constant 1 : i32
    %11 = tpu.dynamic_rotate %8 by %c1_i32 dim 1 : vector<16x128xf32>, i32 -> vector<16x128xf32>
    %12 = arith.addf %6, %10 : vector<16x128xf32>
    %13 = arith.addf %12, %11 : vector<16x128xf32>
    %cst_6 = arith.constant dense<0.000000e+00> : vector<16xf32>
    %14 = vector.multi_reduction <add>, %9, %cst_6 [1] : vector<16x128xf32> to vector<16xf32>
    %15 = vector.shape_cast %14 : vector<16xf32> to vector<16x1xf32>
    %cst_7 = arith.constant 8.000000e-03 : f32
    %16 = vector.broadcast %cst_7 : f32 to vector<16x1xf32>
    %17 = arith.mulf %15, %16 : vector<16x1xf32>
    %18 = arith.negf %13 : vector<16x128xf32>
    %19 = math.exp %18 : vector<16x128xf32>
    %cst_8 = arith.constant 1.000000e+00 : f32
    %20 = vector.broadcast %cst_8 : f32 to vector<16x128xf32>
    %21 = arith.addf %20, %19 : vector<16x128xf32>
    %22 = arith.divf %20, %21 : vector<16x128xf32>
    %23 = arith.negf %17 : vector<16x1xf32>
    %24 = math.exp %23 : vector<16x1xf32>
    %cst_9 = arith.constant 1.000000e+00 : f32
    %25 = vector.broadcast %cst_9 : f32 to vector<16x1xf32>
    %26 = arith.addf %25, %24 : vector<16x1xf32>
    %27 = arith.divf %25, %26 : vector<16x1xf32>
    %cst_10 = arith.constant 5.000000e-01 : f32
    %28 = vector.broadcast %cst_10 : f32 to vector<16x1xf32>
    %29 = arith.mulf %27, %28 : vector<16x1xf32>
    %cst_11 = arith.constant 5.000000e-01 : f32
    %30 = vector.broadcast %cst_11 : f32 to vector<16x128xf32>
    %31 = arith.mulf %22, %30 : vector<16x128xf32>
    %32 = vector.broadcast %29 : vector<16x1xf32> to vector<16x128xf32>
    %33 = arith.addf %32, %31 : vector<16x128xf32>
    %34 = arith.truncf %33 : vector<16x128xf32> to vector<16x128xbf16>
    %c0_12 = arith.constant 0 : index
    %c0_13 = arith.constant 0 : index
    %35 = vector.load %arg3[%c0_12, %c0_13] : memref<128x512xbf16, #tpu.memory_space<vmem>>, vector<128x512xbf16>
    %cst_14 = arith.constant dense<0.000000e+00> : vector<16x512xf32>
    %36 = tpu.matmul %34, %35, %cst_14 {dimension_numbers = #tpu.dot_dimension_numbers<[1], [0], [0], [1], [0, 0, 1, 1], [], []>} : vector<16x128xbf16>, vector<128x512xbf16>, vector<16x512xf32> -> vector<16x512xf32>
    %37 = arith.mulf %0, %36 : vector<16x512xf32>
    %c0_15 = arith.constant 0 : index
    %c0_16 = arith.constant 0 : index
    %38 = vector.load %arg5[%c0_15, %c0_16] : memref<16x512xf32, #tpu.memory_space<vmem>>, vector<16x512xf32>
    tpu.vector_store %arg5[%c0_15, %c0_16], %37 {strides = array<i32>} : memref<16x512xf32, #tpu.memory_space<vmem>>, vector<16x512xf32>,
    return
  }
  func.func @transform_0(%arg0: i32) -> (i32, i32) {
    %c0_i32 = arith.constant 0 : i32
    %c0_i32_0 = arith.constant 0 : i32
    return %arg0, %c0_i32 : i32, i32
  }
  func.func @transform_1(%arg0: i32) -> (i32, i32) {
    %c0_i32 = arith.constant 0 : i32
    %c0_i32_0 = arith.constant 0 : i32
    %c0_i32_1 = arith.constant 0 : i32
    return %c0_i32, %c0_i32_0 : i32, i32
  }
  func.func @transform_2(%arg0: i32) -> (i32, i32) {
    %c0_i32 = arith.constant 0 : i32
    %c0_i32_0 = arith.constant 0 : i32
    %c0_i32_1 = arith.constant 0 : i32
    return %c0_i32, %c0_i32_0 : i32, i32
  }
  func.func @transform_3(%arg0: i32) -> (i32, i32) {
    %c0_i32 = arith.constant 0 : i32
    %c0_i32_0 = arith.constant 0 : i32
    %c0_i32_1 = arith.constant 0 : i32
    return %c0_i32, %c0_i32_0 : i32, i32
  }
  func.func @transform_4(%arg0: i32) -> (i32, i32) {
    %c0_i32 = arith.constant 0 : i32
    %c0_i32_0 = arith.constant 0 : i32
    return %arg0, %c0_i32 : i32, i32
  }
}

</mosaic_0001>

<llo_original>
// kernel: mlca3d_pallas.1
$region0: #{mlca3d_pallas.1}
  #allocation0 [shape = 'u32[]', space=smem, size = 0x4, offset = 0x4, fixed_abs, tag = 'smem constant byte address 0x4 - core index']
  #allocation1 [shape = 'u32[144,128]{1,0:T(1,128)}', space=vmem, size = 0x12000, scoped, tag = 'internal scratch']
  %s0 = inlined_call_operand.vmem [shape: f32[32,512], index: 0, kind: input, shape index: {}]
  %s1 = inlined_call_operand.vmem [shape: bf16[512,128], index: 1, kind: input, shape index: {}]
  %s2 = inlined_call_operand.vmem [shape: bf16[128,512], index: 2, kind: input, shape index: {}]
  %s3 = inlined_call_operand.vmem [shape: f32[64,16], index: 3, kind: input, shape index: {}]
  %s4 = inlined_call_operand.vmem [shape: f32[32,512], index: 4, kind: output, shape index: {}]
  %s5 = sld [smem:[#allocation0]]
  $region49: #{mlca3d_pallas.1} parent=0
    _
  %s7 = ssub.s32 1, %s5
  %s8 = scalar_select 0, %s7, %s5
  loop: start=0, step=1, limit=4
  $region2: #{mlca3d_pallas.1} parent=0 // loop_pre_header
    _
  $region3: #{mlca3d_pallas.1} parent=0 // loop_header
    %s10 = sphi 0, %s14
    %p11 = scmp.ge.s32.totalorder %s10, 4
    %s20 = sphi 0, %s22
    %s23 = sphi 0, %s20
    %s24 = sphi 0, %s23
    %s40 = sphi 0, %s24
    %s44 = sphi 0, %s44
    %s46 = sphi 0, %s44
    %s47 = sphi 0, %s46
    %s61 = sphi 0, %s47
    %s65 = sphi 0, %s65
    %s67 = sphi 0, %s65
    %s68 = sphi 0, %s67
    %s82 = sphi 0, %s68
    %s86 = sphi 0, %s86
    %s88 = sphi 0, %s86
    %s89 = sphi 0, %s88
    %s103 = sphi 0, %s89
    %s109 = sphi 0, %s111
    %s112 = sphi 0, %s109
    %s113 = sphi 0, %s112
    %s129 = sphi 0, %s113
  $region4: #{mlca3d_pallas.1} parent=0 // loop_header_branch
    %13 = sbr.rel (%p11) target = $region8
  $region5: #{mlca3d_pallas.1} parent=0 // loop_body
    %s15 = ssub.s32 %s10, 1
    %s16 = ssub.s32 %s10, 2
    %s17 = sadd.s32 %s10, 1
    %s18 = ssub.s32 %s10, %s17
    %p19 = scmp.eq.s32.totalorder %s18, 0
    %s21 = sadd.s32 %s20, 1
    %s22 = scalar_select %p19, %s20, %s21
    %p25 = pneg %p19
    %p26 = scmp.eq.s32.totalorder %s10, 1
    %p27 = por %p25, %p26
    %p28 = scmp.ne.s32.totalorder %s20, %s23
    %p29 = scmp.eq.s32.totalorder %s10, 0
    %p30 = por %p28, %p29
    %p31 = scmp.ne.s32.totalorder %s20, %s23
    %p32 = scmp.eq.s32.totalorder %s15, 1
    %p33 = por %p31, %p32
    %p34 = scmp.ne.s32.totalorder %s23, %s24
    %p35 = scmp.eq.s32.totalorder %s15, 0
    %p36 = por %p34, %p35
    %p37 = scmp.ne.s32.totalorder %s23, %s24
    %p38 = scmp.eq.s32.totalorder %s16, 1
    %p39 = por %p37, %p38
    %p41 = scmp.ne.s32.totalorder %s24, %s40
    %p42 = scmp.eq.s32.totalorder %s16, 0
    %p43 = por %p41, %p42
    %s45 = sadd.s32 %s44, 1
    %p48 = scmp.eq.s32.totalorder %s10, 1
    %p49 = scmp.ne.s32.totalorder %s44, %s46
    %p50 = scmp.eq.s32.totalorder %s10, 0
    %p51 = por %p49, %p50
    %p52 = scmp.ne.s32.totalorder %s44, %s46
    %p53 = scmp.eq.s32.totalorder %s15, 1
    %p54 = por %p52, %p53
    %p55 = scmp.ne.s32.totalorder %s46, %s47
    %p56 = scmp.eq.s32.totalorder %s15, 0
    %p57 = por %p55, %p56
    %p58 = scmp.ne.s32.totalorder %s46, %s47
    %p59 = scmp.eq.s32.totalorder %s16, 1
    %p60 = por %p58, %p59
    %p62 = scmp.ne.s32.totalorder %s47, %s61
    %p63 = scmp.eq.s32.totalorder %s16, 0
    %p64 = por %p62, %p63
    %s66 = sadd.s32 %s65, 1
    %p69 = scmp.eq.s32.totalorder %s10, 1
    %p70 = scmp.ne.s32.totalorder %s65, %s67
    %p71 = scmp.eq.s32.totalorder %s10, 0
    %p72 = por %p70, %p71
    %p73 = scmp.ne.s32.totalorder %s65, %s67
    %p74 = scmp.eq.s32.totalorder %s15, 1
    %p75 = por %p73, %p74
    %p76 = scmp.ne.s32.totalorder %s67, %s68
    %p77 = scmp.eq.s32.totalorder %s15, 0
    %p78 = por %p76, %p77
    %p79 = scmp.ne.s32.totalorder %s67, %s68
    %p80 = scmp.eq.s32.totalorder %s16, 1
    %p81 = por %p79, %p80
    %p83 = scmp.ne.s32.totalorder %s68, %s82
    %p84 = scmp.eq.s32.totalorder %s16, 0
    %p85 = por %p83, %p84
    %s87 = sadd.s32 %s86, 1
    %p90 = scmp.eq.s32.totalorder %s10, 1
    %p91 = scmp.ne.s32.totalorder %s86, %s88
    %p92 = scmp.eq.s32.totalorder %s10, 0
    %p93 = por %p91, %p92
    %p94 = scmp.ne.s32.totalorder %s86, %s88
    %p95 = scmp.eq.s32.totalorder %s15, 1
    %p96 = por %p94, %p95
    %p97 = scmp.ne.s32.totalorder %s88, %s89
    %p98 = scmp.eq.s32.totalorder %s15, 0
    %p99 = por %p97, %p98
    %p100 = scmp.ne.s32.totalorder %s88, %s89
    %p101 = scmp.eq.s32.totalorder %s16, 1
    %p102 = por %p100, %p101
    %p104 = scmp.ne.s32.totalorder %s89, %s103
    %p105 = scmp.eq.s32.totalorder %s16, 0
    %p106 = por %p104, %p105
    %s107 = ssub.s32 %s10, %s17
    %p108 = scmp.eq.s32.totalorder %s107, 0
    %s110 = sadd.s32 %s109, 1
    %s111 = scalar_select %p108, %s109, %s110
    %p114 = pneg %p108
    %p115 = scmp.eq.s32.totalorder %s10, 1
    %p116 = por %p114, %p115
    %p117 = scmp.ne.s32.totalorder %s109, %s112
    %p118 = scmp.eq.s32.totalorder %s10, 0
    %p119 = por %p117, %p118
    %p120 = scmp.ne.s32.totalorder %s109, %s112
    %p121 = scmp.eq.s32.totalorder %s15, 1
    %p122 = por %p120, %p121
    %p123 = scmp.ne.s32.totalorder %s112, %s113
    %p124 = scmp.eq.s32.totalorder %s15, 0
    %p125 = por %p123, %p124
    %p126 = scmp.ne.s32.totalorder %s112, %s113
    %p127 = scmp.eq.s32.totalorder %s16, 1
    %p128 = por %p126, %p127
    %p130 = scmp.ne.s32.totalorder %s113, %s129
    %p131 = scmp.eq.s32.totalorder %s16, 0
    %p132 = por %p130, %p131
    %p133 = scmp.le.s32.totalorder 1, %s10
    %p134 = scmp.lt.s32.totalorder %s10, 3
    %p135 = pnand %p133, %p134
    %p136 = pneg %p135
    // Predicated region
    $region9: #{mlca3d_pallas.1} parent=5 // pred_check
      _
    $region10: #{mlca3d_pallas.1} parent=5 // pred_check_branch
      %138 = sbr.rel (%p135) target = $region12
    $region11: #{mlca3d_pallas.1} parent=5 // pred_region
      %s139 = ssub.s32 %s10, 1
      // Predicated region
      $region13: #{mlca3d_pallas.1} parent=11 // pred_check
        %p140 = pneg %p57
      $region14: #{mlca3d_pallas.1} parent=11 // pred_check_branch
        %142 = sbr.rel (%p140) target = $region16
      $region15: #{mlca3d_pallas.1} parent=11 // pred_region
        _
      $region16: #{mlca3d_pallas.1} parent=11 // pred_fallthru
        _
      // Predicated region
      $region17: #{mlca3d_pallas.1} parent=11 // pred_check
        %p143 = pneg %p78
      $region18: #{mlca3d_pallas.1} parent=11 // pred_check_branch
        %145 = sbr.rel (%p143) target = $region20
      $region19: #{mlca3d_pallas.1} parent=11 // pred_region
        _
      $region20: #{mlca3d_pallas.1} parent=11 // pred_fallthru
        _
      // Predicated region
      $region21: #{mlca3d_pallas.1} parent=11 // pred_check
        %p146 = pneg %p99
      $region22: #{mlca3d_pallas.1} parent=11 // pred_check_branch
        %148 = sbr.rel (%p146) target = $region24
      $region23: #{mlca3d_pallas.1} parent=11 // pred_region
        _
      $region24: #{mlca3d_pallas.1} parent=11 // pred_fallthru
        _
    $region12: #{mlca3d_pallas.1} parent=5 // pred_fallthru
      _
    %p149 = scmp.lt.s32.totalorder %s10, 2
    // Predicated region
    $region25: #{mlca3d_pallas.1} parent=5 // pred_check
      %p150 = pneg %p149
    $region26: #{mlca3d_pallas.1} parent=5 // pred_check_branch
      %152 = sbr.rel (%p150) target = $region28
    $region27: #{mlca3d_pallas.1} parent=5 // pred_region
      // Predicated region
      $region29: #{mlca3d_pallas.1} parent=27 // pred_check
        %p153 = pneg %p30
      $region30: #{mlca3d_pallas.1} parent=27 // pred_check_branch
        %155 = sbr.rel (%p153) target = $region32
      $region31: #{mlca3d_pallas.1} parent=27 // pred_region
        %s156 = smul.u32 2, %s10
        %p157 = scmp.lt.s32.totalorder %s156, 3
        %s158 = scalar_select %p157, %s156, 3
        %s159 = smul.addr %s158, 4
        %s160 = smul.addr %s159, 8
        %s161 = scalar_lea.vmem %s0, %s160
        %s162 = smul.u32 2, %s10
      $region32: #{mlca3d_pallas.1} parent=27 // pred_fallthru
        _
    $region28: #{mlca3d_pallas.1} parent=5 // pred_fallthru
      _
    %p163 = scmp.le.s32.totalorder 1, %s10
    %p164 = scmp.lt.s32.totalorder %s10, 3
    %p165 = pnand %p163, %p164
    %p166 = pneg %p165
    // Predicated region
    $region33: #{mlca3d_pallas.1} parent=5 // pred_check
      _
    $region34: #{mlca3d_pallas.1} parent=5 // pred_check_branch
      %168 = sbr.rel (%p165) target = $region36
    $region35: #{mlca3d_pallas.1} parent=5 // pred_region
      %s169 = ssub.s32 %s10, 1
      %s170 = smul.u32 2, %s15
      %p171 = scmp.lt.s32.totalorder %s170, 3
      %s172 = scalar_select %p171, %s170, 3
      %s173 = smul.addr %s172, 4
      %s174 = smul.addr %s173, 8
      %s175 = scalar_lea.vmem %s0, %s174
      %p176 = pneg %p36
      %p177 = pneg %p33
      %p178 = pneg %p57
      %p179 = pneg %p54
      %p180 = pneg %p78
      %p181 = pneg %p75
      %p182 = pneg %p99
      %p183 = pneg %p96
      %p184 = pneg %p125
      %p185 = pneg %p122
      %s186 = smul.u32 2, %s15
      %p187 = scmp.lt.s32.totalorder %s186, 3
      %s188 = scalar_select %p187, %s186, 3
      %s189 = smul.addr %s188, 4
      %s190 = smul.addr %s189, 8
      %s191 = scalar_lea.vmem %s4, %s190
      %s192 = smul.u32 2, %s15
      %p193 = scmp.lt.s32.totalorder %s192, 3
      %s194 = scalar_select %p193, %s192, 3
      %s195 = smul.addr %s194, 4
      %s196 = smul.addr %s195, 8
      %s197 = scalar_lea.vmem %s0, %s196
      %s198 = smul.u32 2, %s15
      %s199 = smul.u32 2, %s15
      %p200 = scmp.lt.s32.totalorder %s199, 3
      %s201 = scalar_select %p200, %s199, 3
      %s202 = smul.addr %s201, 4
      %s203 = smul.addr %s202, 8
      %s204 = scalar_lea.vmem %s4, %s203
      %s205 = smul.u32 2, %s15
      %v207 = vld [vmem:[%s197] sm:$0xff]
      %v208 = vld [vmem:[%s197 + $0x8] sm:$0xff]
      %v209 = vld [vmem:[%s197 + $0x10] sm:$0xff]
      %v210 = vld [vmem:[%s197 + $0x18] sm:$0xff]
      %v211 = vld [vmem:[%s197 + $0x20] sm:$0xff]
      %v212 = vld [vmem:[%s197 + $0x28] sm:$0xff]
      %v213 = vld [vmem:[%s197 + $0x30] sm:$0xff]
      %v214 = vld [vmem:[%s197 + $0x38] sm:$0xff]
      %v215 = vpack.c.bf16 %v211, %v207
      %v216 = vpack.c.bf16 %v212, %v208
      %v217 = vpack.c.bf16 %v213, %v209
      %v218 = vpack.c.bf16 %v214, %v210
      %v219 = vld [vmem:[%s1] sm:$0xf]
      %v220 = vld [vmem:[%s1 + $0x4] sm:$0xf]
      %v221 = vld [vmem:[%s1 + $0x8] sm:$0xf]
      %v222 = vld [vmem:[%s1 + $0xc] sm:$0xf]
      %v223 = vld [vmem:[%s1 + $0x10] sm:$0xf]
      %v224 = vld [vmem:[%s1 + $0x14] sm:$0xf]
      %v225 = vld [vmem:[%s1 + $0x18] sm:$0xf]
      %v226 = vld [vmem:[%s1 + $0x1c] sm:$0xf]
      %v227 = vld [vmem:[%s1 + $0x20] sm:$0xf]
      %v228 = vld [vmem:[%s1 + $0x24] sm:$0xf]
      %v229 = vld [vmem:[%s1 + $0x28] sm:$0xf]
      %v230 = vld [vmem:[%s1 + $0x2c] sm:$0xf]
      %v231 = vld [vmem:[%s1 + $0x30] sm:$0xf]
      %v232 = vld [vmem:[%s1 + $0x34] sm:$0xf]
      %v233 = vld [vmem:[%s1 + $0x38] sm:$0xf]
      %v234 = vld [vmem:[%s1 + $0x3c] sm:$0xf]
      %v235 = vld [vmem:[%s1 + $0x40] sm:$0xf]
      %v236 = vld [vmem:[%s1 + $0x44] sm:$0xf]
      %v237 = vld [vmem:[%s1 + $0x48] sm:$0xf]
      %v238 = vld [vmem:[%s1 + $0x4c] sm:$0xf]
      %v239 = vld [vmem:[%s1 + $0x50] sm:$0xf]
      %v240 = vld [vmem:[%s1 + $0x54] sm:$0xf]
      %v241 = vld [vmem:[%s1 + $0x58] sm:$0xf]
      %v242 = vld [vmem:[%s1 + $0x5c] sm:$0xf]
      %v243 = vld [vmem:[%s1 + $0x60] sm:$0xf]
      %v244 = vld [vmem:[%s1 + $0x64] sm:$0xf]
      %v245 = vld [vmem:[%s1 + $0x68] sm:$0xf]
      %v246 = vld [vmem:[%s1 + $0x6c] sm:$0xf]
      %v247 = vld [vmem:[%s1 + $0x70] sm:$0xf]
      %v248 = vld [vmem:[%s1 + $0x74] sm:$0xf]
      %v249 = vld [vmem:[%s1 + $0x78] sm:$0xf]
      %v250 = vld [vmem:[%s1 + $0x7c] sm:$0xf]
      %v251 = vld [vmem:[%s1 + $0x80] sm:$0xf]
      %v252 = vld [vmem:[%s1 + $0x84] sm:$0xf]
      %v253 = vld [vmem:[%s1 + $0x88] sm:$0xf]
      %v254 = vld [vmem:[%s1 + $0x8c] sm:$0xf]
      %v255 = vld [vmem:[%s1 + $0x90] sm:$0xf]
      %v256 = vld [vmem:[%s1 + $0x94] sm:$0xf]
      %v257 = vld [vmem:[%s1 + $0x98] sm:$0xf]
      %v258 = vld [vmem:[%s1 + $0x9c] sm:$0xf]
      %v259 = vld [vmem:[%s1 + $0xa0] sm:$0xf]
      %v260 = vld [vmem:[%s1 + $0xa4] sm:$0xf]
      %v261 = vld [vmem:[%s1 + $0xa8] sm:$0xf]
      %v262 = vld [vmem:[%s1 + $0xac] sm:$0xf]
      %v263 = vld [vmem:[%s1 + $0xb0] sm:$0xf]
      %v264 = vld [vmem:[%s1 + $0xb4] sm:$0xf]
      %v265 = vld [vmem:[%s1 + $0xb8] sm:$0xf]
      %v266 = vld [vmem:[%s1 + $0xbc] sm:$0xf]
      %v267 = vld [vmem:[%s1 + $0xc0] sm:$0xf]
      %v268 = vld [vmem:[%s1 + $0xc4] sm:$0xf]
      %v269 = vld [vmem:[%s1 + $0xc8] sm:$0xf]
      %v270 = vld [vmem:[%s1 + $0xcc] sm:$0xf]
      %v271 = vld [vmem:[%s1 + $0xd0] sm:$0xf]
      %v272 = vld [vmem:[%s1 + $0xd4] sm:$0xf]
      %v273 = vld [vmem:[%s1 + $0xd8] sm:$0xf]
      %v274 = vld [vmem:[%s1 + $0xdc] sm:$0xf]
      %v275 = vld [vmem:[%s1 + $0xe0] sm:$0xf]
      %v276 = vld [vmem:[%s1 + $0xe4] sm:$0xf]
      %v277 = vld [vmem:[%s1 + $0xe8] sm:$0xf]
      %v278 = vld [vmem:[%s1 + $0xec] sm:$0xf]
      %v279 = vld [vmem:[%s1 + $0xf0] sm:$0xf]
      %v280 = vld [vmem:[%s1 + $0xf4] sm:$0xf]
      %v281 = vld [vmem:[%s1 + $0xf8] sm:$0xf]
      %v282 = vld [vmem:[%s1 + $0xfc] sm:$0xf]
      %v347 = vunpack.c.l.b16 %v219
      %v348 = vunpack.c.l.b16 %v220
      %v349 = vunpack.c.l.b16 %v221
      %v350 = vunpack.c.l.b16 %v222
      %v351 = vunpack.c.l.b16 %v223
      %v352 = vunpack.c.l.b16 %v224
      %v353 = vunpack.c.l.b16 %v225
      %v354 = vunpack.c.l.b16 %v226
      %v355 = vunpack.c.l.b16 %v227
      %v356 = vunpack.c.l.b16 %v228
      %v357 = vunpack.c.l.b16 %v229
      %v358 = vunpack.c.l.b16 %v230
      %v359 = vunpack.c.l.b16 %v231
      %v360 = vunpack.c.l.b16 %v232
      %v361 = vunpack.c.l.b16 %v233
      %v362 = vunpack.c.l.b16 %v234
      %v363 = vunpack.c.l.b16 %v235
      %v364 = vunpack.c.l.b16 %v236
      %v365 = vunpack.c.l.b16 %v237
      %v366 = vunpack.c.l.b16 %v238
      %v367 = vunpack.c.l.b16 %v239
      %v368 = vunpack.c.l.b16 %v240
      %v369 = vunpack.c.l.b16 %v241
      %v370 = vunpack.c.l.b16 %v242
      %v371 = vunpack.c.l.b16 %v243
      %v372 = vunpack.c.l.b16 %v244
      %v373 = vunpack.c.l.b16 %v245
      %v374 = vunpack.c.l.b16 %v246
      %v375 = vunpack.c.l.b16 %v247
      %v376 = vunpack.c.l.b16 %v248
      %v377 = vunpack.c.l.b16 %v249
      %v378 = vunpack.c.l.b16 %v250
      %v379 = vunpack.c.l.b16 %v251
      %v380 = vunpack.c.l.b16 %v252
      %v381 = vunpack.c.l.b16 %v253
      %v382 = vunpack.c.l.b16 %v254
      %v383 = vunpack.c.l.b16 %v255
      %v384 = vunpack.c.l.b16 %v256
      %v385 = vunpack.c.l.b16 %v257
      %v386 = vunpack.c.l.b16 %v258
      %v387 = vunpack.c.l.b16 %v259
      %v388 = vunpack.c.l.b16 %v260
      %v389 = vunpack.c.l.b16 %v261
      %v390 = vunpack.c.l.b16 %v262
      %v391 = vunpack.c.l.b16 %v263
      %v392 = vunpack.c.l.b16 %v264
      %v393 = vunpack.c.l.b16 %v265
      %v394 = vunpack.c.l.b16 %v266
      %v395 = vunpack.c.l.b16 %v267
      %v396 = vunpack.c.l.b16 %v268
      %v397 = vunpack.c.l.b16 %v269
      %v398 = vunpack.c.l.b16 %v270
      %v399 = vunpack.c.l.b16 %v271
      %v400 = vunpack.c.l.b16 %v272
      %v401 = vunpack.c.l.b16 %v273
      %v402 = vunpack.c.l.b16 %v274
      %v403 = vunpack.c.l.b16 %v275
      %v404 = vunpack.c.l.b16 %v276
      %v405 = vunpack.c.l.b16 %v277
      %v406 = vunpack.c.l.b16 %v278
      %v407 = vunpack.c.l.b16 %v279
      %v408 = vunpack.c.l.b16 %v280
      %v409 = vunpack.c.l.b16 %v281
      %v410 = vunpack.c.l.b16 %v282
      %v411 = vpack.c.b16 %v348, %v347
      %v412 = vpack.c.b16 %v350, %v349
      %v413 = vpack.c.b16 %v352, %v351
      %v414 = vpack.c.b16 %v354, %v353
      %v415 = vpack.c.b16 %v356, %v355
      %v416 = vpack.c.b16 %v358, %v357
      %v417 = vpack.c.b16 %v360, %v359
      %v418 = vpack.c.b16 %v362, %v361
      %v419 = vpack.c.b16 %v364, %v363
      %v420 = vpack.c.b16 %v366, %v365
      %v421 = vpack.c.b16 %v368, %v367
      %v422 = vpack.c.b16 %v370, %v369
      %v423 = vpack.c.b16 %v372, %v371
      %v424 = vpack.c.b16 %v374, %v373
      %v425 = vpack.c.b16 %v376, %v375
      %v426 = vpack.c.b16 %v378, %v377
      %v427 = vpack.c.b16 %v380, %v379
      %v428 = vpack.c.b16 %v382, %v381
      %v429 = vpack.c.b16 %v384, %v383
      %v430 = vpack.c.b16 %v386, %v385
      %v431 = vpack.c.b16 %v388, %v387
      %v432 = vpack.c.b16 %v390, %v389
      %v433 = vpack.c.b16 %v392, %v391
      %v434 = vpack.c.b16 %v394, %v393
      %v435 = vpack.c.b16 %v396, %v395
      %v436 = vpack.c.b16 %v398, %v397
      %v437 = vpack.c.b16 %v400, %v399
      %v438 = vpack.c.b16 %v402, %v401
      %v439 = vpack.c.b16 %v404, %v403
      %v440 = vpack.c.b16 %v406, %v405
      %v441 = vpack.c.b16 %v408, %v407
      %v442 = vpack.c.b16 %v410, %v409
      %475 = vmatprep.subr.bf16.mxu0 0
      %476 = vmatpush1.bf16.msra.mxu0 %v418
      %477 = vmatprep.subr.bf16.mxu0 0
      %478 = vmatpush1.bf16.msra.mxu0 %v417
      %479 = vmatprep.subr.bf16.mxu0 0
      %480 = vmatpush1.bf16.msra.mxu0 %v416
      %481 = vmatprep.subr.bf16.mxu0 0
      %482 = vmatpush1.bf16.msra.mxu0 %v415
      %483 = vmatprep.subr.bf16.mxu0 0
      %484 = vmatpush1.bf16.msra.mxu0 %v414
      %485 = vmatprep.subr.bf16.mxu0 0
      %486 = vmatpush1.bf16.msra.mxu0 %v413
      %487 = vmatprep.subr.bf16.mxu0 0
      %488 = vmatpush1.bf16.msra.mxu0 %v412
      %489 = vmatprep.subr.bf16.mxu0 0
      %490 = vmatpush1.bf16.msra.mxu0 %v411
      %491 = vmatprep.subr.bf16.mxu0 0
      %492 = vmatpush2.bf16.msra.mxu0 %v426
      %493 = vmatprep.subr.bf16.mxu0 0
      %494 = vmatpush2.bf16.msra.mxu0 %v425
      %495 = vmatprep.subr.bf16.mxu0 0
      %496 = vmatpush2.bf16.msra.mxu0 %v424
      %497 = vmatprep.subr.bf16.mxu0 0
      %498 = vmatpush2.bf16.msra.mxu0 %v423
      %499 = vmatprep.subr.bf16.mxu0 0
      %500 = vmatpush2.bf16.msra.mxu0 %v422
      %501 = vmatprep.subr.bf16.mxu0 0
      %502 = vmatpush2.bf16.msra.mxu0 %v421
      %503 = vmatprep.subr.bf16.mxu0 0
      %504 = vmatpush2.bf16.msra.mxu0 %v420
      %505 = vmatprep.subr.bf16.mxu0 0
      %506 = vmatpush2.bf16.msra.mxu0 %v419
      %507 = vmatprep.mubr.bf16.mxu0 %v216
      %508 = vmatmul.mubr.bf16.gmra.mxu0 %v215
      %v509 = vpop.f32.mrf.mxu0
      %v510 = vadd.f32 0.0, %v509
      %v511 = vpop.f32.mrf.mxu0
      %v512 = vpop.f32.mrf.mxu0
      %v513 = vadd.f32 0.0, %v512
      %v514 = vpop.f32.mrf.mxu0
      %515 = vdwg.mxu0
      %516 = vmatprep.subr.bf16.mxu0 0
      %517 = vmatpush1.bf16.msra.mxu0 %v434
      %518 = vmatprep.subr.bf16.mxu0 0
      %519 = vmatpush1.bf16.msra.mxu0 %v433
      %520 = vmatprep.subr.bf16.mxu0 0
      %521 = vmatpush1.bf16.msra.mxu0 %v432
      %522 = vmatprep.subr.bf16.mxu0 0
      %523 = vmatpush1.bf16.msra.mxu0 %v431
      %524 = vmatprep.subr.bf16.mxu0 0
      %525 = vmatpush1.bf16.msra.mxu0 %v430
      %526 = vmatprep.subr.bf16.mxu0 0
      %527 = vmatpush1.bf16.msra.mxu0 %v429
      %528 = vmatprep.subr.bf16.mxu0 0
      %529 = vmatpush1.bf16.msra.mxu0 %v428
      %530 = vmatprep.subr.bf16.mxu0 0
      %531 = vmatpush1.bf16.msra.mxu0 %v427
      %532 = vmatprep.subr.bf16.mxu0 0
      %533 = vmatpush2.bf16.msra.mxu0 %v442
      %534 = vmatprep.subr.bf16.mxu0 0
      %535 = vmatpush2.bf16.msra.mxu0 %v441
      %536 = vmatprep.subr.bf16.mxu0 0
      %537 = vmatpush2.bf16.msra.mxu0 %v440
      %538 = vmatprep.subr.bf16.mxu0 0
      %539 = vmatpush2.bf16.msra.mxu0 %v439
      %540 = vmatprep.subr.bf16.mxu0 0
      %541 = vmatpush2.bf16.msra.mxu0 %v438
      %542 = vmatprep.subr.bf16.mxu0 0
      %543 = vmatpush2.bf16.msra.mxu0 %v437
      %544 = vmatprep.subr.bf16.mxu0 0
      %545 = vmatpush2.bf16.msra.mxu0 %v436
      %546 = vmatprep.subr.bf16.mxu0 0
      %547 = vmatpush2.bf16.msra.mxu0 %v435
      %548 = vmatprep.mubr.bf16.mxu0 %v218
      %549 = vmatmul.mubr.bf16.gmra.mxu0 %v217
      %v550 = vpop.f32.mrf.mxu0
      %v551 = vadd.f32 %v510, %v550
      %v552 = vpop.f32.mrf.mxu0
      %v553 = vpop.f32.mrf.mxu0
      %v554 = vadd.f32 %v513, %v553
      %v555 = vpop.f32.mrf.mxu0
      %556 = vdwg.mxu0
      %v557 = vld [vmem:[%s3] sm:$0xff]
      %v558 = vld [vmem:[%s3 + $0x8] sm:$0xff]
      %v559 = vld [vmem:[%s3 + $0x10] sm:$0xff]
      %v560 = vld [vmem:[%s3 + $0x18] sm:$0xff]
      %v561 = vld [vmem:[%s3 + $0x20] sm:$0xff]
      %v562 = vld [vmem:[%s3 + $0x28] sm:$0xff]
      %v563 = vld [vmem:[%s3 + $0x30] sm:$0xff]
      %v564 = vld [vmem:[%s3 + $0x38] sm:$0xff]
      %vm565 = vcmask 130048
      %v567 = vsel %vm565, %v557, 0
      %v570 = vsel %vm565, %v558, 0
      %v573 = vsel %vm565, %v559, 0
      %v576 = vsel %vm565, %v560, 0
      %v579 = vsel %vm565, %v561, 0
      %v582 = vsel %vm565, %v562, 0
      %v585 = vsel %vm565, %v563, 0
      %v588 = vsel %vm565, %v564, 0
      %590 = vmatprep.subr.mxu0 0.0
      %591 = vmatpush1.msra.mxu0 0.0
      %592 = vmatprep.subr.mxu0 0.0
      %593 = vmatpush1.msra.mxu0 0.0
      %594 = vmatprep.subr.mxu0 0.0
      %595 = vmatpush1.msra.mxu0 0.0
      %596 = vmatprep.subr.mxu0 0.0
      %597 = vmatpush1.msra.mxu0 0.0
      %598 = vmatprep.subr.mxu0 0.0
      %599 = vmatpush1.msra.mxu0 0.0
      %600 = vmatprep.subr.mxu0 0.0
      %601 = vmatpush1.msra.mxu0 0.0
      %602 = vmatprep.subr.mxu0 0.0
      %603 = vmatpush1.msra.mxu0 0.0
      %604 = vmatprep.subr.mxu0 0.0
      %605 = vmatpush1.msra.mxu0 0.0
      %606 = vmatprep.subr.mxu0 0.0
      %607 = vmatpush1.msra.mxu0 0.0
      %608 = vmatprep.subr.mxu0 0.0
      %609 = vmatpush1.msra.mxu0 0.0
      %610 = vmatprep.subr.mxu0 0.0
      %611 = vmatpush1.msra.mxu0 0.0
      %612 = vmatprep.subr.mxu0 0.0
      %613 = vmatpush1.msra.mxu0 0.0
      %614 = vmatprep.subr.mxu0 0.0
      %615 = vmatpush1.msra.mxu0 0.0
      %616 = vmatprep.subr.mxu0 0.0
      %617 = vmatpush1.msra.mxu0 0.0
      %618 = vmatprep.subr.mxu0 0.0
      %619 = vmatpush1.msra.mxu0 %v554
      %620 = vmatprep.subr.mxu0 0.0
      %621 = vmatpush1.msra.mxu0 %v551
      %622 = vmatprep.subr.mxu0 0.0
      %623 = vmatpush2.msra.mxu0 0.0
      %624 = vmatprep.subr.mxu0 0.0
      %625 = vmatpush2.msra.mxu0 0.0
      %626 = vmatprep.subr.mxu0 0.0
      %627 = vmatpush2.msra.mxu0 0.0
      %628 = vmatprep.subr.mxu0 0.0
      %629 = vmatpush2.msra.mxu0 0.0
      %630 = vmatprep.subr.mxu0 0.0
      %631 = vmatpush2.msra.mxu0 0.0
      %632 = vmatprep.subr.mxu0 0.0
      %633 = vmatpush2.msra.mxu0 0.0
      %634 = vmatprep.subr.mxu0 0.0
      %635 = vmatpush2.msra.mxu0 0.0
      %636 = vmatprep.subr.mxu0 0.0
      %637 = vmatpush2.msra.mxu0 0.0
      %638 = vmatprep.subr.mxu0 0.0
      %639 = vmatpush2.msra.mxu0 0.0
      %640 = vmatprep.subr.mxu0 0.0
      %641 = vmatpush2.msra.mxu0 0.0
      %642 = vmatprep.subr.mxu0 0.0
      %643 = vmatpush2.msra.mxu0 0.0
      %644 = vmatprep.subr.mxu0 0.0
      %645 = vmatpush2.msra.mxu0 0.0
      %646 = vmatprep.subr.mxu0 0.0
      %647 = vmatpush2.msra.mxu0 0.0
      %648 = vmatprep.subr.mxu0 0.0
      %649 = vmatpush2.msra.mxu0 0.0
      %650 = vmatprep.subr.mxu0 0.0
      %651 = vmatpush2.msra.mxu0 0.0
      %652 = vmatprep.subr.mxu0 0.0
      %653 = vmatpush2.msra.mxu0 0.0
      %654 = vmatprep.mubr.f32.mxu0 0.0
      %655 = vmatmul.mubr.f32.gmra.mxu0 %v567
      %v656 = vpop.f32.mrf.mxu0
      %v657 = vadd.f32 0.0, %v656
      %v658 = vpop.f32.mrf.mxu0
      %659 = vmatprep.mubr.f32.mxu0 0.0
      %660 = vmatmul.mubr.f32.gmra.mxu0 %v570
      %v661 = vpop.f32.mrf.mxu0
      %v662 = vadd.f32 0.0, %v661
      %v663 = vpop.f32.mrf.mxu0
      %664 = vmatprep.mubr.f32.mxu0 0.0
      %665 = vmatmul.mubr.f32.gmra.mxu0 %v573
      %v666 = vpop.f32.mrf.mxu0
      %v667 = vadd.f32 0.0, %v666
      %v668 = vpop.f32.mrf.mxu0
      %669 = vmatprep.mubr.f32.mxu0 0.0
      %670 = vmatmul.mubr.f32.gmra.mxu0 %v576
      %v671 = vpop.f32.mrf.mxu0
      %v672 = vadd.f32 0.0, %v671
      %v673 = vpop.f32.mrf.mxu0
      %674 = vmatprep.mubr.f32.mxu0 0.0
      %675 = vmatmul.mubr.f32.gmra.mxu0 %v579
      %v676 = vpop.f32.mrf.mxu0
      %v677 = vadd.f32 0.0, %v676
      %v678 = vpop.f32.mrf.mxu0
      %679 = vmatprep.mubr.f32.mxu0 0.0
      %680 = vmatmul.mubr.f32.gmra.mxu0 %v582
      %v681 = vpop.f32.mrf.mxu0
      %v682 = vadd.f32 0.0, %v681
      %v683 = vpop.f32.mrf.mxu0
      %684 = vmatprep.mubr.f32.mxu0 0.0
      %685 = vmatmul.mubr.f32.gmra.mxu0 %v585
      %v686 = vpop.f32.mrf.mxu0
      %v687 = vadd.f32 0.0, %v686
      %v688 = vpop.f32.mrf.mxu0
      %689 = vmatprep.mubr.f32.mxu0 0.0
      %690 = vmatmul.mubr.f32.gmra.mxu0 %v588
      %v691 = vpop.f32.mrf.mxu0
      %v692 = vadd.f32 0.0, %v691
      %v693 = vpop.f32.mrf.mxu0
      %694 = vdwg.mxu0
      %695 = vrot.lane.b32.xlu0 %v667, 127
      %v696 = vpop.permute.xlu0 %695
      %697 = vrot.lane.b32.xlu0 %v672, 127
      %v698 = vpop.permute.xlu0 %697
      %699 = vrot.lane.b32.xlu0 %v677, 1
      %v700 = vpop.permute.xlu0 %699
      %701 = vrot.lane.b32.xlu0 %v682, 1
      %v702 = vpop.permute.xlu0 %701
      %v703 = vadd.f32 %v657, %v696
      %v704 = vadd.f32 %v662, %v698
      %v705 = vadd.f32 %v703, %v700
      %v706 = vadd.f32 %v704, %v702
      %707 = vadd.xlane.f32.xlu0 %v687
      %v708 = vpop.xlane.xlu0 %707
      %709 = vadd.xlane.f32.xlu0 %v692
      %v710 = vpop.xlane.xlu0 %709
      %v711 = vmul.f32 %v708, 0.008
      %v712 = vmul.f32 %v710, 0.008
      %v713 = vxor.u32 %v705, 2147483648
      %v714 = vxor.u32 %v706, 2147483648
      %v715 = vmul.f32 %v713, 1.442695
      %v716 = vpow.pop %v715
      %v717 = vmul.f32 %v714, 1.442695
      %v718 = vpow.pop %v717
      %v719 = vadd.f32 %v716, 1.0
      %v720 = vadd.f32 %v718, 1.0
      %v721 = vrcp.pop %v719
      %v722 = vmul.f32 1.0, %v721
      %v723 = vrcp.pop %v720
      %v724 = vmul.f32 1.0, %v723
      %v725 = vxor.u32 %v711, 2147483648
      %v726 = vxor.u32 %v712, 2147483648
      %v727 = vmul.f32 %v725, 1.442695
      %v728 = vpow.pop %v727
      %v729 = vmul.f32 %v726, 1.442695
      %v730 = vpow.pop %v729
      %v731 = vadd.f32 %v728, 1.0
      %v732 = vadd.f32 %v730, 1.0
      %v733 = vrcp.pop %v731
      %v734 = vmul.f32 1.0, %v733
      %v735 = vrcp.pop %v732
      %v736 = vmul.f32 1.0, %v735
      %v737 = vmul.f32 %v734, 0.5
      %v738 = vmul.f32 %v736, 0.5
      %v739 = vmul.f32 %v722, 0.5
      %v740 = vmul.f32 %v724, 0.5
      %v741 = vadd.f32 %v737, %v739
      %v742 = vadd.f32 %v738, %v740
      %v743 = vpack.c.bf16 %v742, %v741
      %v744 = vld [vmem:[%s2] sm:$0xff]
      %v745 = vld [vmem:[%s2 + $0x8] sm:$0xff]
      %v746 = vld [vmem:[%s2 + $0x10] sm:$0xff]
      %v747 = vld [vmem:[%s2 + $0x18] sm:$0xff]
      %v748 = vld [vmem:[%s2 + $0x20] sm:$0xff]
      %v749 = vld [vmem:[%s2 + $0x28] sm:$0xff]
      %v750 = vld [vmem:[%s2 + $0x30] sm:$0xff]
      %v751 = vld [vmem:[%s2 + $0x38] sm:$0xff]
      %v752 = vld [vmem:[%s2 + $0x40] sm:$0xff]
      %v753 = vld [vmem:[%s2 + $0x48] sm:$0xff]
      %v754 = vld [vmem:[%s2 + $0x50] sm:$0xff]
      %v755 = vld [vmem:[%s2 + $0x58] sm:$0xff]
      %v756 = vld [vmem:[%s2 + $0x60] sm:$0xff]
      %v757 = vld [vmem:[%s2 + $0x68] sm:$0xff]
      %v758 = vld [vmem:[%s2 + $0x70] sm:$0xff]
      %v759 = vld [vmem:[%s2 + $0x78] sm:$0xff]
      %v760 = vld [vmem:[%s2 + $0x80] sm:$0xff]
      %v761 = vld [vmem:[%s2 + $0x88] sm:$0xff]
      %v762 = vld [vmem:[%s2 + $0x90] sm:$0xff]
      %v763 = vld [vmem:[%s2 + $0x98] sm:$0xff]
      %v764 = vld [vmem:[%s2 + $0xa0] sm:$0xff]
      %v765 = vld [vmem:[%s2 + $0xa8] sm:$0xff]
      %v766 = vld [vmem:[%s2 + $0xb0] sm:$0xff]
      %v767 = vld [vmem:[%s2 + $0xb8] sm:$0xff]
      %v768 = vld [vmem:[%s2 + $0xc0] sm:$0xff]
      %v769 = vld [vmem:[%s2 + $0xc8] sm:$0xff]
      %v770 = vld [vmem:[%s2 + $0xd0] sm:$0xff]
      %v771 = vld [vmem:[%s2 + $0xd8] sm:$0xff]
      %v772 = vld [vmem:[%s2 + $0xe0] sm:$0xff]
      %v773 = vld [vmem:[%s2 + $0xe8] sm:$0xff]
      %v774 = vld [vmem:[%s2 + $0xf0] sm:$0xff]
      %v775 = vld [vmem:[%s2 + $0xf8] sm:$0xff]
      %v808 = vunpack.c.l.b16 %v744
      %v809 = vunpack.c.h.b16 %v744
      %v810 = vunpack.c.l.b16 %v745
      %v811 = vunpack.c.h.b16 %v745
      %v812 = vunpack.c.l.b16 %v746
      %v813 = vunpack.c.h.b16 %v746
      %v814 = vunpack.c.l.b16 %v747
      %v815 = vunpack.c.h.b16 %v747
      %v816 = vunpack.c.l.b16 %v748
      %v817 = vunpack.c.h.b16 %v748
      %v818 = vunpack.c.l.b16 %v749
      %v819 = vunpack.c.h.b16 %v749
      %v820 = vunpack.c.l.b16 %v750
      %v821 = vunpack.c.h.b16 %v750
      %v822 = vunpack.c.l.b16 %v751
      %v823 = vunpack.c.h.b16 %v751
      %v824 = vunpack.c.l.b16 %v752
      %v825 = vunpack.c.h.b16 %v752
      %v826 = vunpack.c.l.b16 %v753
      %v827 = vunpack.c.h.b16 %v753
      %v828 = vunpack.c.l.b16 %v754
      %v829 = vunpack.c.h.b16 %v754
      %v830 = vunpack.c.l.b16 %v755
      %v831 = vunpack.c.h.b16 %v755
      %v832 = vunpack.c.l.b16 %v756
      %v833 = vunpack.c.h.b16 %v756
      %v834 = vunpack.c.l.b16 %v757
      %v835 = vunpack.c.h.b16 %v757
      %v836 = vunpack.c.l.b16 %v758
      %v837 = vunpack.c.h.b16 %v758
      %v838 = vunpack.c.l.b16 %v759
      %v839 = vunpack.c.h.b16 %v759
      %v840 = vunpack.c.l.b16 %v760
      %v841 = vunpack.c.h.b16 %v760
      %v842 = vunpack.c.l.b16 %v761
      %v843 = vunpack.c.h.b16 %v761
      %v844 = vunpack.c.l.b16 %v762
      %v845 = vunpack.c.h.b16 %v762
      %v846 = vunpack.c.l.b16 %v763
      %v847 = vunpack.c.h.b16 %v763
      %v848 = vunpack.c.l.b16 %v764
      %v849 = vunpack.c.h.b16 %v764
      %v850 = vunpack.c.l.b16 %v765
      %v851 = vunpack.c.h.b16 %v765
      %v852 = vunpack.c.l.b16 %v766
      %v853 = vunpack.c.h.b16 %v766
      %v854 = vunpack.c.l.b16 %v767
      %v855 = vunpack.c.h.b16 %v767
      %v856 = vunpack.c.l.b16 %v768
      %v857 = vunpack.c.h.b16 %v768
      %v858 = vunpack.c.l.b16 %v769
      %v859 = vunpack.c.h.b16 %v769
      %v860 = vunpack.c.l.b16 %v770
      %v861 = vunpack.c.h.b16 %v770
      %v862 = vunpack.c.l.b16 %v771
      %v863 = vunpack.c.h.b16 %v771
      %v864 = vunpack.c.l.b16 %v772
      %v865 = vunpack.c.h.b16 %v772
      %v866 = vunpack.c.l.b16 %v773
      %v867 = vunpack.c.h.b16 %v773
      %v868 = vunpack.c.l.b16 %v774
      %v869 = vunpack.c.h.b16 %v774
      %v870 = vunpack.c.l.b16 %v775
      %v871 = vunpack.c.h.b16 %v775
      %v872 = vpack.c.b16 %v812, %v808
      %v873 = vpack.c.b16 %v813, %v809
      %v874 = vpack.c.b16 %v814, %v810
      %v875 = vpack.c.b16 %v815, %v811
      %v876 = vpack.c.b16 %v820, %v816
      %v877 = vpack.c.b16 %v821, %v817
      %v878 = vpack.c.b16 %v822, %v818
      %v879 = vpack.c.b16 %v823, %v819
      %v880 = vpack.c.b16 %v828, %v824
      %v881 = vpack.c.b16 %v829, %v825
      %v882 = vpack.c.b16 %v830, %v826
      %v883 = vpack.c.b16 %v831, %v827
      %v884 = vpack.c.b16 %v836, %v832
      %v885 = vpack.c.b16 %v837, %v833
      %v886 = vpack.c.b16 %v838, %v834
      %v887 = vpack.c.b16 %v839, %v835
      %v888 = vpack.c.b16 %v844, %v840
      %v889 = vpack.c.b16 %v845, %v841
      %v890 = vpack.c.b16 %v846, %v842
      %v891 = vpack.c.b16 %v847, %v843
      %v892 = vpack.c.b16 %v852, %v848
      %v893 = vpack.c.b16 %v853, %v849
      %v894 = vpack.c.b16 %v854, %v850
      %v895 = vpack.c.b16 %v855, %v851
      %v896 = vpack.c.b16 %v860, %v856
      %v897 = vpack.c.b16 %v861, %v857
      %v898 = vpack.c.b16 %v862, %v858
      %v899 = vpack.c.b16 %v863, %v859
      %v900 = vpack.c.b16 %v868, %v864
      %v901 = vpack.c.b16 %v869, %v865
      %v902 = vpack.c.b16 %v870, %v866
      %v903 = vpack.c.b16 %v871, %v867
      %936 = vmatprep.subr.bf16.mxu0 %v901
      %937 = vmatpush1.bf16.msra.mxu0 %v900
      %938 = vmatprep.subr.bf16.mxu0 %v897
      %939 = vmatpush1.bf16.msra.mxu0 %v896
      %940 = vmatprep.subr.bf16.mxu0 %v893
      %941 = vmatpush1.bf16.msra.mxu0 %v892
      %942 = vmatprep.subr.bf16.mxu0 %v889
      %943 = vmatpush1.bf16.msra.mxu0 %v888
      %944 = vmatprep.subr.bf16.mxu0 %v885
      %945 = vmatpush1.bf16.msra.mxu0 %v884
      %946 = vmatprep.subr.bf16.mxu0 %v881
      %947 = vmatpush1.bf16.msra.mxu0 %v880
      %948 = vmatprep.subr.bf16.mxu0 %v877
      %949 = vmatpush1.bf16.msra.mxu0 %v876
      %950 = vmatprep.subr.bf16.mxu0 %v873
      %951 = vmatpush1.bf16.msra.mxu0 %v872
      %952 = vmatprep.subr.bf16.mxu0 0
      %953 = vmatpush2.bf16.msra.mxu0 0
      %954 = vmatprep.subr.bf16.mxu0 0
      %955 = vmatpush2.bf16.msra.mxu0 0
      %956 = vmatprep.subr.bf16.mxu0 0
      %957 = vmatpush2.bf16.msra.mxu0 0
      %958 = vmatprep.subr.bf16.mxu0 0
      %959 = vmatpush2.bf16.msra.mxu0 0
      %960 = vmatprep.subr.bf16.mxu0 0
      %961 = vmatpush2.bf16.msra.mxu0 0
      %962 = vmatprep.subr.bf16.mxu0 0
      %963 = vmatpush2.bf16.msra.mxu0 0
      %964 = vmatprep.subr.bf16.mxu0 0
      %965 = vmatpush2.bf16.msra.mxu0 0
      %966 = vmatprep.subr.bf16.mxu0 0
      %967 = vmatpush2.bf16.msra.mxu0 0
      %968 = vmatprep.mubr.bf16.mxu0 0
      %969 = vmatmul.mubr.bf16.gmra.mxu0 %v743
      %v970 = vpop.f32.mrf.mxu0
      %v971 = vadd.f32 0.0, %v970
      %v972 = vpop.f32.mrf.mxu0
      %v973 = vadd.f32 0.0, %v972
      %v974 = vpop.f32.mrf.mxu0
      %v975 = vadd.f32 0.0, %v974
      %v976 = vpop.f32.mrf.mxu0
      %v977 = vadd.f32 0.0, %v976
      %978 = vdwg.mxu0
      %979 = vmatprep.subr.bf16.mxu0 %v903
      %980 = vmatpush1.bf16.msra.mxu0 %v902
      %981 = vmatprep.subr.bf16.mxu0 %v899
      %982 = vmatpush1.bf16.msra.mxu0 %v898
      %983 = vmatprep.subr.bf16.mxu0 %v895
      %984 = vmatpush1.bf16.msra.mxu0 %v894
      %985 = vmatprep.subr.bf16.mxu0 %v891
      %986 = vmatpush1.bf16.msra.mxu0 %v890
      %987 = vmatprep.subr.bf16.mxu0 %v887
      %988 = vmatpush1.bf16.msra.mxu0 %v886
      %989 = vmatprep.subr.bf16.mxu0 %v883
      %990 = vmatpush1.bf16.msra.mxu0 %v882
      %991 = vmatprep.subr.bf16.mxu0 %v879
      %992 = vmatpush1.bf16.msra.mxu0 %v878
      %993 = vmatprep.subr.bf16.mxu0 %v875
      %994 = vmatpush1.bf16.msra.mxu0 %v874
      %995 = vmatprep.subr.bf16.mxu0 0
      %996 = vmatpush2.bf16.msra.mxu0 0
      %997 = vmatprep.subr.bf16.mxu0 0
      %998 = vmatpush2.bf16.msra.mxu0 0
      %999 = vmatprep.subr.bf16.mxu0 0
      %1000 = vmatpush2.bf16.msra.mxu0 0
      %1001 = vmatprep.subr.bf16.mxu0 0
      %1002 = vmatpush2.bf16.msra.mxu0 0
      %1003 = vmatprep.subr.bf16.mxu0 0
      %1004 = vmatpush2.bf16.msra.mxu0 0
      %1005 = vmatprep.subr.bf16.mxu0 0
      %1006 = vmatpush2.bf16.msra.mxu0 0
      %1007 = vmatprep.subr.bf16.mxu0 0
      %1008 = vmatpush2.bf16.msra.mxu0 0
      %1009 = vmatprep.subr.bf16.mxu0 0
      %1010 = vmatpush2.bf16.msra.mxu0 0
      %1011 = vmatprep.mubr.bf16.mxu0 0
      %1012 = vmatmul.mubr.bf16.gmra.mxu0 %v743
      %v1013 = vpop.f32.mrf.mxu0
      %v1014 = vadd.f32 0.0, %v1013
      %v1015 = vpop.f32.mrf.mxu0
      %v1016 = vadd.f32 0.0, %v1015
      %v1017 = vpop.f32.mrf.mxu0
      %v1018 = vadd.f32 0.0, %v1017
      %v1019 = vpop.f32.mrf.mxu0
      %v1020 = vadd.f32 0.0, %v1019
      %1021 = vdwg.mxu0
      %v1022 = vmul.f32 %v207, %v971
      %v1023 = vmul.f32 %v208, %v973
      %v1024 = vmul.f32 %v209, %v1014
      %v1025 = vmul.f32 %v210, %v1016
      %v1026 = vmul.f32 %v211, %v975
      %v1027 = vmul.f32 %v212, %v977
      %v1028 = vmul.f32 %v213, %v1018
      %v1029 = vmul.f32 %v214, %v1020
      %1030 = vst [vmem:[%s204] sm:$0xff] %v1022
      %1031 = vst [vmem:[%s204 + $0x8] sm:$0xff] %v1023
      %1032 = vst [vmem:[%s204 + $0x10] sm:$0xff] %v1024
      %1033 = vst [vmem:[%s204 + $0x18] sm:$0xff] %v1025
      %1034 = vst [vmem:[%s204 + $0x20] sm:$0xff] %v1026
      %1035 = vst [vmem:[%s204 + $0x28] sm:$0xff] %v1027
      %1036 = vst [vmem:[%s204 + $0x30] sm:$0xff] %v1028
      %1037 = vst [vmem:[%s204 + $0x38] sm:$0xff] %v1029
      %s1038 = smul.u32 2, %s15
      %p1039 = scmp.lt.s32.totalorder %s1038, 3
      %s1040 = scalar_select %p1039, %s1038, 3
      %s1041 = smul.addr %s1040, 4
      %s1042 = smul.addr %s1041, 8
      %s1043 = scalar_lea.vmem %s4, %s1042
      // Predicated region
      $region37: #{mlca3d_pallas.1} parent=35 // pred_check
        %p1044 = pneg %p122
      $region38: #{mlca3d_pallas.1} parent=35 // pred_check_branch
        %1046 = sbr.rel (%p1044) target = $region40
      $region39: #{mlca3d_pallas.1} parent=35 // pred_region
        %s1047 = smul.u32 2, %s15
      $region40: #{mlca3d_pallas.1} parent=35 // pred_fallthru
        _
    $region36: #{mlca3d_pallas.1} parent=5 // pred_fallthru
      _
    %p1048 = scmp.le.s32.totalorder 2, %s10
    // Predicated region
    $region41: #{mlca3d_pallas.1} parent=5 // pred_check
      %p1049 = pneg %p1048
    $region42: #{mlca3d_pallas.1} parent=5 // pred_check_branch
      %1051 = sbr.rel (%p1049) target = $region44
    $region43: #{mlca3d_pallas.1} parent=5 // pred_region
      %s1052 = ssub.s32 %s10, 2
      // Predicated region
      $region45: #{mlca3d_pallas.1} parent=43 // pred_check
        %p1053 = pneg %p128
      $region46: #{mlca3d_pallas.1} parent=43 // pred_check_branch
        %1055 = sbr.rel (%p1053) target = $region48
      $region47: #{mlca3d_pallas.1} parent=43 // pred_region
        %s1056 = smul.u32 2, %s16
        %p1057 = scmp.lt.s32.totalorder %s1056, 3
        %s1058 = scalar_select %p1057, %s1056, 3
        %s1059 = smul.addr %s1058, 4
        %s1060 = smul.addr %s1059, 8
        %s1061 = scalar_lea.vmem %s4, %s1060
      $region48: #{mlca3d_pallas.1} parent=43 // pred_fallthru
        _
    $region44: #{mlca3d_pallas.1} parent=5 // pred_fallthru
      _
  $region6: #{mlca3d_pallas.1} parent=0 // loop_footer
    %s14 = sadd.s32 1, %s10
  $region7: #{mlca3d_pallas.1} parent=0 // loop_footer_branch
    %9 = sbr.rel target = $region3
  $region8: #{mlca3d_pallas.1} parent=0 // loop_exit
    _

</llo_original>
